<compile_context>
chip_gen: v7x
topology: tpu7x:2x2x1
jax: 0.10.0
libtpu: 0.0.40
codegen_flags: <defaults>
</compile_context>

<pallas_src>
import functools

import jax
import jax.numpy as jnp
from jax import lax
from jax.experimental import pallas as pl
from jax.experimental.pallas import tpu as pltpu

LANE = 128        # vreg lane width
SUB = 8           # vreg sublane count (f32)
CHUNK_ROWS = 512  # rows per inner accumulation chunk (512,128) f32 = 256 KiB

try:
    _DEVICE_KIND = jax.devices()[0].device_kind.lower()
except Exception:  # pragma: no cover - fall back to the most conservative sizing
    _DEVICE_KIND = ""
_IS_V7X = "v7" in _DEVICE_KIND  # 2 TensorCores / 64 MiB VMEM per TC

# Per-input DMA block size target and scoped-VMEM budget, per generation.
_TARGET_BLOCK_BYTES = (4 << 20) if _IS_V7X else (8 << 20)
_VMEM_LIMIT_BYTES = (40 << 20) if _IS_V7X else (64 << 20)
_NCORES = 2 if _IS_V7X else 1


def _round_up(x, m):
    return ((x + m - 1) // m) * m


def _mse_partial_kernel(rows_ref, yp_ref, yt_ref, o_ref, acc_ref, *, chunk):
    """Accumulate per-lane partial sums of squared diffs into an (8,128) f32 acc."""
    c = pl.program_id(0)                 # shard axis ("parallel")
    j = pl.program_id(1)                 # reduction axis ("arbitrary", innermost)
    nsteps = pl.num_programs(1)

    @pl.when(j == 0)
    def _():
        acc_ref[...] = jnp.zeros_like(acc_ref)

    tile_rows = yp_ref.shape[0]
    n_chunks = tile_rows // chunk

    # Logical (unclamped) block position; clamped duplicate reads (shard with
    # fewer blocks) land fully out of range and contribute exactly 0.
    # Row-based indexing: int32 is safe up to 2**31 *rows* (~2.7e11 elements).
    blk = c * nsteps + j
    row0 = blk * tile_rows
    valid_rows = rows_ref[0]

    def chunk_sum(r0, r0_abs, masked):
        d = (yp_ref[pl.ds(r0, chunk), :].astype(jnp.float32)
             - yt_ref[pl.ds(r0, chunk), :].astype(jnp.float32))
        if masked:
            # Row-only mask (the wrapper guarantees lane-aligned data).
            rid = lax.broadcasted_iota(jnp.int32, (chunk, LANE), 0) + r0_abs
            d = jnp.where(rid < valid_rows, d, 0.0)
        sq = (d * d).reshape(chunk // SUB, SUB, LANE)
        return jnp.sum(sq, axis=0)        # pure VPU adds, no per-step XLU reduce

    if n_chunks == 1:
        def run(masked):
            acc_ref[...] += chunk_sum(0, row0, masked)
    else:
        def run(masked):
            def body(i, carry):
                r0 = pl.multiple_of(i * chunk, chunk)
                acc_ref[...] += chunk_sum(r0, row0 + i * chunk, masked)
                return carry
            lax.fori_loop(0, n_chunks, body, 0)

    # Fast (mask-free) path for fully-in-range tiles; masked path only for the
    # single ragged / clamped tile.
    in_range = (row0 + tile_rows) <= valid_rows

    @pl.when(in_range)
    def _():
        run(masked=False)

    @pl.when(jnp.logical_not(in_range))
    def _():
        run(masked=True)

    @pl.when(j == nsteps - 1)
    def _():
        o_ref[...] = acc_ref[...]


def mse(y_pred, y_true):
    assert y_pred.shape == y_true.shape, "MSE metric expects matching shapes"
    n_elems = y_pred.size
    out_dtype = jnp.promote_types(y_pred.dtype, y_true.dtype)

    ypf = jnp.ravel(y_pred)
    ytf = jnp.ravel(y_true)

    rows = n_elems // LANE
    rem = n_elems % LANE

    # < 128-element tail (or tiny inputs): plain jnp, negligible cost.
    tail_sum = jnp.float32(0.0)
    if rem:
        tp = ypf[rows * LANE:].astype(jnp.float32)
        tt = ytf[rows * LANE:].astype(jnp.float32)
        tail_sum = jnp.sum((tp - tt) ** 2)

    if rows == 0:
        total = tail_sum
        return (total / jnp.float32(n_elems)).astype(out_dtype)

    # Lane-dense (rows, 128) view of the lane-aligned prefix. Free reshape when
    # n_elems % 128 == 0 (common case); the ragged case pays only a prefix slice
    # (no jnp.pad of the whole input).
    if rem:
        ypk = ypf[: rows * LANE].reshape(rows, LANE)
        ytk = ytf[: rows * LANE].reshape(rows, LANE)
    else:
        ypk = ypf.reshape(rows, LANE)
        ytk = ytf.reshape(rows, LANE)

    itemsizes = (jnp.dtype(y_pred.dtype).itemsize, jnp.dtype(y_true.dtype).itemsize)
    # Sublane packing requirement (8 for f32, 16 for bf16, 32 for int8/fp8).
    pack = SUB * max(1, 4 // min(itemsizes))
    # Largest block that fits the per-generation byte target, multiple of CHUNK_ROWS.
    max_tile_rows = max(CHUNK_ROWS,
                        (_TARGET_BLOCK_BYTES // (LANE * max(itemsizes)))
                        // CHUNK_ROWS * CHUNK_ROWS)

    if rows >= CHUNK_ROWS:
        tile_rows = min(max_tile_rows, _round_up(rows, CHUNK_ROWS))
        chunk = CHUNK_ROWS
    else:
        tile_rows = _round_up(rows, pack)
        chunk = tile_rows

    assert rows < 2 ** 31, "row count must fit in int32"
    n_blocks = pl.cdiv(rows, tile_rows)
    shards = max(1, min(_NCORES, n_blocks))   # 2 only on v7x (2 TensorCores)
    steps = pl.cdiv(n_blocks, shards)

    def in_index_map(c, j, rows_ref):
        # Clamp so no fully out-of-bounds block is ever requested; the kernel
        # zeroes such tiles via the logical row index.
        return (jnp.minimum(c * steps + j, n_blocks - 1), 0)

    in_bytes = rows * LANE * (itemsizes[0] + itemsizes[1])
    cost = pl.CostEstimate(
        flops=3 * n_elems,
        transcendentals=0,
        bytes_accessed=in_bytes + shards * SUB * LANE * 4,
    )

    kernel = functools.partial(_mse_partial_kernel, chunk=chunk)

    # TODO(synk): if profiling on v7x still shows an exposed DMA gap, sweep
    # pipeline_mode=pl.Buffered(3) on the two input BlockSpecs.
    partials = pl.pallas_call(
        kernel,
        out_shape=jax.ShapeDtypeStruct((shards, SUB, LANE), jnp.float32),
        grid_spec=pltpu.PrefetchScalarGridSpec(
            num_scalar_prefetch=1,
            grid=(shards, steps),
            in_specs=[
                pl.BlockSpec((tile_rows, LANE), in_index_map),
                pl.BlockSpec((tile_rows, LANE), in_index_map),
            ],
            out_specs=pl.BlockSpec((None, SUB, LANE), lambda c, j, rows_ref: (c, 0, 0)),
            scratch_shapes=[pltpu.VMEM((SUB, LANE), jnp.float32)],
        ),
        compiler_params=pltpu.CompilerParams(
            dimension_semantics=("parallel", "arbitrary"),
            vmem_limit_bytes=_VMEM_LIMIT_BYTES,
        ),
        cost_estimate=cost,
    )(jnp.array([rows], dtype=jnp.int32), ypk, ytk)

    # Single cross-lane reduction of the tiny partial buffer, done once.
    total = jnp.sum(partials) + tail_sum
    return (total / jnp.float32(n_elems)).astype(out_dtype)


if __name__ == "__main__":
    key = jax.random.PRNGKey(0)
    k1, k2 = jax.random.split(key)
    # Small NCHW-like inputs consistent with a generic MSE metric module.
    y_pred = jax.random.normal(k1, (2, 4, 16, 16), dtype=jnp.float32)
    y_true = jax.random.normal(k2, (2, 4, 16, 16), dtype=jnp.float32)

    out = jax.block_until_ready(mse(y_pred, y_true))

    ref = jnp.mean((y_pred - y_true) ** 2)
    assert jnp.allclose(out, ref, rtol=1e-5, atol=1e-6), (out, ref)
    print("KERNEL_OK")
</pallas_src>

<mosaic_0001>
module attributes {stable_mosaic.version = 11 : i64} {
  func.func @_mse_partial_kernel(%arg0: i32, %arg1: i32, %arg2: memref<1xi32, #tpu.memory_space<smem>>, %arg3: memref<16x128xf32, #tpu.memory_space<vmem>>, %arg4: memref<16x128xf32, #tpu.memory_space<vmem>>, %arg5: memref<1x8x128xf32, #tpu.memory_space<vmem>>, %arg6: memref<8x128xf32, #tpu.memory_space<vmem>>) attributes {dimension_semantics = [#tpu.dimension_semantics<parallel>, #tpu.dimension_semantics<arbitrary>], iteration_bounds = array<i64: 1, 1>, scalar_prefetch = 1 : i64, scratch_operands = 1 : i64, tpu.core_type = #tpu.core_type<tc>, window_params = [{transform_indices = @transform_0, window_bounds = array<i64: 16, 128>}, {transform_indices = @transform_1, window_bounds = array<i64: 16, 128>}, {transform_indices = @transform_2, window_bounds = array<i64: 1, 8, 128>}]} {
    %c0_i32 = arith.constant 0 : i32
    %0 = arith.cmpi eq, %arg1, %c0_i32 : i32
    %1 = arith.extui %0 : i1 to i32
    %c0_i32_0 = arith.constant 0 : i32
    %2 = arith.cmpi ne, %1, %c0_i32_0 : i32
    scf.if %2 {
      %cst = arith.constant 0.000000e+00 : f32
      %17 = vector.broadcast %cst : f32 to vector<8x128xf32>
      %c0_6 = arith.constant 0 : index
      %c0_7 = arith.constant 0 : index
      %18 = vector.load %arg6[%c0_6, %c0_7] : memref<8x128xf32, #tpu.memory_space<vmem>>, vector<8x128xf32>
      tpu.vector_store %arg6[%c0_6, %c0_7], %17 {strides = array<i32>} : memref<8x128xf32, #tpu.memory_space<vmem>>, vector<8x128xf32>,
    } else {
    }
    %c1_i32 = arith.constant 1 : i32
    %3 = arith.muli %arg0, %c1_i32 : i32
    %4 = arith.addi %3, %arg1 : i32
    %c16_i32 = arith.constant 16 : i32
    %5 = arith.muli %4, %c16_i32 : i32
    %c0 = arith.constant 0 : index
    %6 = memref.load %arg2[%c0] : memref<1xi32, #tpu.memory_space<smem>>
    %c16_i32_1 = arith.constant 16 : i32
    %7 = arith.addi %5, %c16_i32_1 : i32
    %8 = arith.cmpi sle, %7, %6 : i32
    %9 = arith.extui %8 : i1 to i32
    %c0_i32_2 = arith.constant 0 : i32
    %10 = arith.cmpi ne, %9, %c0_i32_2 : i32
    scf.if %10 {
      %c0_6 = arith.constant 0 : index
      %c0_7 = arith.constant 0 : index
      %17 = vector.load %arg6[%c0_6, %c0_7] : memref<8x128xf32, #tpu.memory_space<vmem>>, vector<8x128xf32>
      %c0_8 = arith.constant 0 : index
      %c0_9 = arith.constant 0 : index
      %18 = vector.load %arg3[%c0_8, %c0_9] : memref<16x128xf32, #tpu.memory_space<vmem>>, vector<16x128xf32>
      %c0_10 = arith.constant 0 : index
      %c0_11 = arith.constant 0 : index
      %19 = vector.load %arg4[%c0_10, %c0_11] : memref<16x128xf32, #tpu.memory_space<vmem>>, vector<16x128xf32>
      %20 = arith.subf %18, %19 : vector<16x128xf32>
      %21 = arith.mulf %20, %20 : vector<16x128xf32>
      %22 = vector.shape_cast %21 : vector<16x128xf32> to vector<2x8x128xf32>
      %cst = arith.constant dense<0.000000e+00> : vector<8x128xf32>
      %23 = vector.multi_reduction <add>, %22, %cst [0] : vector<2x8x128xf32> to vector<8x128xf32>
      %24 = arith.addf %17, %23 : vector<8x128xf32>
      %c0_12 = arith.constant 0 : index
      %c0_13 = arith.constant 0 : index
      %25 = vector.load %arg6[%c0_12, %c0_13] : memref<8x128xf32, #tpu.memory_space<vmem>>, vector<8x128xf32>
      tpu.vector_store %arg6[%c0_12, %c0_13], %24 {strides = array<i32>} : memref<8x128xf32, #tpu.memory_space<vmem>>, vector<8x128xf32>,
    } else {
    }
    %true = arith.constant true
    %11 = arith.xori %8, %true : i1
    %12 = arith.extui %11 : i1 to i32
    %c0_i32_3 = arith.constant 0 : i32
    %13 = arith.cmpi ne, %12, %c0_i32_3 : i32
    scf.if %13 {
      %c0_6 = arith.constant 0 : index
      %c0_7 = arith.constant 0 : index
      %17 = vector.load %arg6[%c0_6, %c0_7] : memref<8x128xf32, #tpu.memory_space<vmem>>, vector<8x128xf32>
      %c0_8 = arith.constant 0 : index
      %c0_9 = arith.constant 0 : index
      %18 = vector.load %arg3[%c0_8, %c0_9] : memref<16x128xf32, #tpu.memory_space<vmem>>, vector<16x128xf32>
      %c0_10 = arith.constant 0 : index
      %c0_11 = arith.constant 0 : index
      %19 = vector.load %arg4[%c0_10, %c0_11] : memref<16x128xf32, #tpu.memory_space<vmem>>, vector<16x128xf32>
      %20 = arith.subf %18, %19 : vector<16x128xf32>
      %21 = tpu.iota {dimensions = array<i32: 0>} : vector<16x128xi32>
      %22 = vector.broadcast %5 : i32 to vector<16x128xi32>
      %23 = arith.addi %21, %22 : vector<16x128xi32>
      %24 = vector.broadcast %6 : i32 to vector<16x128xi32>
      %25 = arith.cmpi slt, %23, %24 : vector<16x128xi32>
      %cst = arith.constant 0.000000e+00 : f32
      %26 = vector.broadcast %cst : f32 to vector<16x128xf32>
      %27 = arith.select %25, %20, %26 : vector<16x128xi1>, vector<16x128xf32>
      %28 = arith.mulf %27, %27 : vector<16x128xf32>
      %29 = vector.shape_cast %28 : vector<16x128xf32> to vector<2x8x128xf32>
      %cst_12 = arith.constant dense<0.000000e+00> : vector<8x128xf32>
      %30 = vector.multi_reduction <add>, %29, %cst_12 [0] : vector<2x8x128xf32> to vector<8x128xf32>
      %31 = arith.addf %17, %30 : vector<8x128xf32>
      %c0_13 = arith.constant 0 : index
      %c0_14 = arith.constant 0 : index
      %32 = vector.load %arg6[%c0_13, %c0_14] : memref<8x128xf32, #tpu.memory_space<vmem>>, vector<8x128xf32>
      tpu.vector_store %arg6[%c0_13, %c0_14], %31 {strides = array<i32>} : memref<8x128xf32, #tpu.memory_space<vmem>>, vector<8x128xf32>,
    } else {
    }
    %c0_i32_4 = arith.constant 0 : i32
    %14 = arith.cmpi eq, %arg1, %c0_i32_4 : i32
    %15 = arith.extui %14 : i1 to i32
    %c0_i32_5 = arith.constant 0 : i32
    %16 = arith.cmpi ne, %15, %c0_i32_5 : i32
    scf.if %16 {
      %c0_6 = arith.constant 0 : index
      %c0_7 = arith.constant 0 : index
      %17 = vector.load %arg6[%c0_6, %c0_7] : memref<8x128xf32, #tpu.memory_space<vmem>>, vector<8x128xf32>
      %c0_8 = arith.constant 0 : index
      %c0_9 = arith.constant 0 : index
      %c0_10 = arith.constant 0 : index
      %18 = vector.load %arg5[%c0_8, %c0_9, %c0_10] : memref<1x8x128xf32, #tpu.memory_space<vmem>>, vector<1x8x128xf32>
      %19 = vector.shape_cast %18 : vector<1x8x128xf32> to vector<8x128xf32>
      %20 = vector.shape_cast %17 : vector<8x128xf32> to vector<1x8x128xf32>
      tpu.vector_store %arg5[%c0_8, %c0_9, %c0_10], %20 {strides = array<i32>} : memref<1x8x128xf32, #tpu.memory_space<vmem>>, vector<1x8x128xf32>,
    } else {
    }
    return
  }
  func.func @transform_0(%arg0: i32, %arg1: i32, %arg2: memref<1xi32, #tpu.memory_space<smem>>) -> (i32, i32) {
    %c1_i32 = arith.constant 1 : i32
    %0 = arith.muli %arg0, %c1_i32 : i32
    %1 = arith.addi %0, %arg1 : i32
    %c0_i32 = arith.constant 0 : i32
    %2 = arith.minsi %1, %c0_i32 : i32
    %c0_i32_0 = arith.constant 0 : i32
    %c0_i32_1 = arith.constant 0 : i32
    return %2, %c0_i32_0 : i32, i32
  }
  func.func @transform_1(%arg0: i32, %arg1: i32, %arg2: memref<1xi32, #tpu.memory_space<smem>>) -> (i32, i32) {
    %c1_i32 = arith.constant 1 : i32
    %0 = arith.muli %arg0, %c1_i32 : i32
    %1 = arith.addi %0, %arg1 : i32
    %c0_i32 = arith.constant 0 : i32
    %2 = arith.minsi %1, %c0_i32 : i32
    %c0_i32_0 = arith.constant 0 : i32
    %c0_i32_1 = arith.constant 0 : i32
    return %2, %c0_i32_0 : i32, i32
  }
  func.func @transform_2(%arg0: i32, %arg1: i32, %arg2: memref<1xi32, #tpu.memory_space<smem>>) -> (i32, i32, i32) {
    %c0_i32 = arith.constant 0 : i32
    %c0_i32_0 = arith.constant 0 : i32
    %c0_i32_1 = arith.constant 0 : i32
    return %arg0, %c0_i32, %c0_i32_0 : i32, i32, i32
  }
}

</mosaic_0001>

<llo_original>
// kernel: tpu_custom_call.1
$region0: #{tpu_custom_call.1}
  #allocation0 [shape = 'u32[]', space=smem, size = 0x4, offset = 0x4, fixed_abs, tag = 'smem constant byte address 0x4 - core index']
  #allocation1 [shape = 'u32[144,128]{1,0:T(1,128)}', space=vmem, size = 0x12000, scoped, tag = 'internal scratch']
  #allocation2 [shape = 'f32[8,128]{1,0:T(8,128)}', space=vmem, size = 0x1000, scoped, tag = 'scratch operand']
  #allocation3 [shape = 's32[1]{0}', space=sflag, size = 0x4, scoped, tag = 'scoped memory for tpu_custom_call.1']
  #allocation4 [shape = 's32[1]{0:T(128)S(6)}', space=smem, size = 0x200, scoped, tag = 'prefetched SMEM operand 0']
  %s0 = inlined_call_operand.<no memory space> [shape: s32[1], index: 0, kind: input, shape index: {}]
  %s1 = inlined_call_operand.hbm [shape: f32[16,128], index: 1, kind: input, shape index: {}]
  %s2 = inlined_call_operand.hbm [shape: f32[16,128], index: 2, kind: input, shape index: {}]
  %s3 = inlined_call_operand.hbm [shape: f32[1,8,128], index: 3, kind: output, shape index: {}]
  %s4 = sld [smem:[#allocation0]]
  $region42: #{tpu_custom_call.1} parent=0
    _
  %s6 = ssub.s32 1, %s4
  %s7 = scalar_select 0, %s6, %s4
  %8 = sst [smem:[#allocation4]] %s0
  $region1: #{tpu_custom_call.1} parent=0
    #allocation5 [shape = 'u8[8192]{0}', space=vmem, size = 0x2000, scoped, tag = 'input window, operand 1, single buffered']
    #allocation6 [shape = 's32[1]{0}', space=sflag, size = 0x4, scoped, tag = 'scoped memory for tpu_custom_call.1']
    #allocation7 [shape = 's32[1]{0}', space=sflag, size = 0x4, scoped, tag = 'scoped memory for tpu_custom_call.1']
    #allocation8 [shape = 'u8[8192]{0}', space=vmem, size = 0x2000, scoped, tag = 'input window, operand 2, single buffered']
    #allocation9 [shape = 's32[1]{0}', space=sflag, size = 0x4, scoped, tag = 'scoped memory for tpu_custom_call.1']
    #allocation10 [shape = 'u8[4096]{0}', space=vmem, size = 0x1000, scoped, tag = 'output window, operand 0, single buffered']
    %9 = vsyncpa [#allocation6], 0
    %10 = vsyncpa [#allocation9], 0
    %11 = vsyncpa [#allocation7], 0
    // Predicated region
    $region2: #{tpu_custom_call.1} parent=1 // pred_check
      _
    $region3: #{tpu_custom_call.1} parent=1 // pred_check_branch
      %13 = sbr.rel (0) target = $region5
    $region4: #{tpu_custom_call.1} parent=1 // pred_region
      %s14 = sadd.s32 0, 0
      %p15 = scmp.lt.s32.totalorder %s14, 0
      %s16 = scalar_select %p15, %s14, 0
      %s17 = smul.u32 2, %s16
      %s19 = ssub.s32 256, 256
      %20 = vsyncadd [#allocation6], %s19
      %s21 = smul.addr %s17, 128
      %s22 = scalar_lea.hbm %s1, %s21
      %s23 = sshll.u32 [#allocation5], 4
      %s24 = int_to_ptr.vmem [resolvable:$true] %s23
      %29 = dma.hbm_to_vmem [thread:$0]  %s22, 256, %s24, [#allocation6], 128, 128, 8
    $region5: #{tpu_custom_call.1} parent=1 // pred_fallthru
      _
    // Predicated region
    $region6: #{tpu_custom_call.1} parent=1 // pred_check
      _
    $region7: #{tpu_custom_call.1} parent=1 // pred_check_branch
      %31 = sbr.rel (0) target = $region9
    $region8: #{tpu_custom_call.1} parent=1 // pred_region
      %s32 = sadd.s32 0, 0
      %p33 = scmp.lt.s32.totalorder %s32, 0
      %s34 = scalar_select %p33, %s32, 0
      %s35 = smul.u32 2, %s34
      %s37 = ssub.s32 256, 256
      %38 = vsyncadd [#allocation9], %s37
      %s39 = smul.addr %s35, 128
      %s40 = scalar_lea.hbm %s2, %s39
      %s41 = sshll.u32 [#allocation8], 4
      %s42 = int_to_ptr.vmem [resolvable:$true] %s41
      %47 = dma.hbm_to_vmem [thread:$0]  %s40, 256, %s42, [#allocation9], 128, 128, 8
    $region9: #{tpu_custom_call.1} parent=1 // pred_fallthru
      _
    // Predicated region
    $region10: #{tpu_custom_call.1} parent=1 // pred_check
      _
    $region11: #{tpu_custom_call.1} parent=1 // pred_check_branch
      %49 = sbr.rel (0) target = $region13
    $region12: #{tpu_custom_call.1} parent=1 // pred_region
      %50 = dma.done [#allocation6], 256
    $region13: #{tpu_custom_call.1} parent=1 // pred_fallthru
      _
    // Predicated region
    $region14: #{tpu_custom_call.1} parent=1 // pred_check
      _
    $region15: #{tpu_custom_call.1} parent=1 // pred_check_branch
      %52 = sbr.rel (0) target = $region17
    $region16: #{tpu_custom_call.1} parent=1 // pred_region
      %53 = dma.done [#allocation9], 256
    $region17: #{tpu_custom_call.1} parent=1 // pred_fallthru
      _
    %s54 = sadd.s32 0, 0
    %p55 = scmp.lt.s32.totalorder %s54, 0
    %s56 = scalar_select %p55, %s54, 0
    %s57 = smul.u32 2, %s56
    %s58 = sadd.s32 0, 0
    %p59 = scmp.lt.s32.totalorder %s58, 0
    %s60 = scalar_select %p59, %s58, 0
    %s61 = smul.u32 2, %s60
    %p62 = scmp.eq.s32.totalorder 0, 0
    // Predicated region
    $region18: #{tpu_custom_call.1} parent=1 // pred_check
      %p63 = pneg %p62
    $region19: #{tpu_custom_call.1} parent=1 // pred_check_branch
      %65 = sbr.rel (%p63) target = $region21
    $region20: #{tpu_custom_call.1} parent=1 // pred_region
      %66 = vst [vmem:[#allocation2] sm:$0xff] 0.0
    $region21: #{tpu_custom_call.1} parent=1 // pred_fallthru
      _
    %s67 = sadd.s32 0, 0
    %s68 = smul.u32 %s67, 16
    %s69 = sld [smem:[#allocation4]]
    %s70 = sadd.s32 %s68, 16
    %p71 = scmp.le.s32.totalorder %s70, %s69
    // Predicated region
    $region22: #{tpu_custom_call.1} parent=1 // pred_check
      %p72 = pneg %p71
    $region23: #{tpu_custom_call.1} parent=1 // pred_check_branch
      %74 = sbr.rel (%p72) target = $region25
    $region24: #{tpu_custom_call.1} parent=1 // pred_region
      %v75 = vld [vmem:[#allocation2] sm:$0xff]
      %v76 = vld [vmem:[#allocation5] sm:$0xff]
      %v77 = vld [vmem:[#allocation5 + $0x8] sm:$0xff]
      %v78 = vld [vmem:[#allocation8] sm:$0xff]
      %v79 = vld [vmem:[#allocation8 + $0x8] sm:$0xff]
      %v80 = vsub.f32 %v76, %v78
      %v81 = vsub.f32 %v77, %v79
      %v82 = vmul.f32 %v80, %v80
      %v83 = vmul.f32 %v81, %v81
      %v84 = vadd.f32 %v82, %v83
      %v85 = vadd.f32 %v75, %v84
      %86 = vst [vmem:[#allocation2] sm:$0xff] %v85
    $region25: #{tpu_custom_call.1} parent=1 // pred_fallthru
      _
    %p87 = scmp.gt.s32.totalorder %s70, %s69
    // Predicated region
    $region26: #{tpu_custom_call.1} parent=1 // pred_check
      %p88 = pneg %p87
    $region27: #{tpu_custom_call.1} parent=1 // pred_check_branch
      %90 = sbr.rel (%p88) target = $region29
    $region28: #{tpu_custom_call.1} parent=1 // pred_region
      %v91 = vld [vmem:[#allocation2] sm:$0xff]
      %v92 = vld [vmem:[#allocation5] sm:$0xff]
      %v93 = vld [vmem:[#allocation5 + $0x8] sm:$0xff]
      %v94 = vld [vmem:[#allocation8] sm:$0xff]
      %v95 = vld [vmem:[#allocation8 + $0x8] sm:$0xff]
      %v96 = vsub.f32 %v92, %v94
      %v97 = vsub.f32 %v93, %v95
      %v98 = vlaneseq
      %v99 = vshrl.u32 %v98, 7
      %v100 = vadd.s32 %v99, 8
      %v101 = vstv %s68
      %v102 = vadd.s32 %v99, %v101
      %v103 = vadd.s32 %v100, %v101
      %v104 = vstv %s69
      %vm105 = vcmp.lt.s32.totalorder %v102, %v104
      %vm106 = vcmp.lt.s32.totalorder %v103, %v104
      %v107 = vsel %vm105, %v96, 0.0
      %v108 = vsel %vm106, %v97, 0.0
      %v109 = vmul.f32 %v107, %v107
      %v110 = vmul.f32 %v108, %v108
      %v111 = vadd.f32 %v109, %v110
      %v112 = vadd.f32 %v91, %v111
      %113 = vst [vmem:[#allocation2] sm:$0xff] %v112
    $region29: #{tpu_custom_call.1} parent=1 // pred_fallthru
      _
    // Predicated region
    $region30: #{tpu_custom_call.1} parent=1 // pred_check
      %p114 = pneg %p62
    $region31: #{tpu_custom_call.1} parent=1 // pred_check_branch
      %116 = sbr.rel (%p114) target = $region33
    $region32: #{tpu_custom_call.1} parent=1 // pred_region
      %v117 = vld [vmem:[#allocation2] sm:$0xff]
      %118 = vst [vmem:[#allocation10] sm:$0xff] %v117
    $region33: #{tpu_custom_call.1} parent=1 // pred_fallthru
      _
    // Predicated region
    $region34: #{tpu_custom_call.1} parent=1 // pred_check
      _
    $region35: #{tpu_custom_call.1} parent=1 // pred_check_branch
      %120 = sbr.rel (0) target = $region37
    $region36: #{tpu_custom_call.1} parent=1 // pred_region
      %s122 = ssub.s32 128, 128
      %123 = vsyncadd [#allocation7], %s122
      %s125 = sshll.u32 [#allocation10], 4
      %s126 = int_to_ptr.vmem [resolvable:$true] %s125
      %128 = dma.vmem_to_hbm [thread:$0]  %s126, 128, %s3, [#allocation7]
    $region37: #{tpu_custom_call.1} parent=1 // pred_fallthru
      _
    // Predicated region
    $region38: #{tpu_custom_call.1} parent=1 // pred_check
      _
    $region39: #{tpu_custom_call.1} parent=1 // pred_check_branch
      %130 = sbr.rel (0) target = $region41
    $region40: #{tpu_custom_call.1} parent=1 // pred_region
      %131 = dma.done [#allocation7], 128
    $region41: #{tpu_custom_call.1} parent=1 // pred_fallthru
      _
    %132 = vsyncpa [#allocation6], 1
    %133 = vsyncpa [#allocation9], 1
    %134 = vsyncpa [#allocation7], 1

</llo_original>
